<compile_context>
chip_gen: v7x
topology: tpu7x:2x2x1
jax: 0.10.0
libtpu: 0.0.40
codegen_flags: <defaults>
</compile_context>

<pallas_src>
import functools

import jax
import jax.numpy as jnp
from jax import lax
from jax.experimental import pallas as pl
from jax.experimental.pallas import tpu as pltpu


def _siamfc_kernel(z_ref, x_ref, o_ref, *, hz, wz, wx, w_out, out_scale):
    # z_ref: (B, T, C)   bf16, T = HZ*WZ taps, tap-major then channel
    # x_ref: (B, C, L)   bf16, L = HX*WX flattened search image
    # o_ref: (B, 1, W)   output in flat "input-row-major" coords,
    #                    W = (HO-1)*WX + WO; wrapper unpacks to (HO, WO).
    zb = z_ref[...]
    xb = x_ref[...]

    # Single MXU contraction over channels for every tap at once.
    g = jnp.einsum("btc,bcl->btl", zb, xb,
                   preferred_element_type=jnp.float32)      # (B, T, L) f32

    bsz, _, l = g.shape
    acc = jnp.zeros((bsz, 1, w_out), jnp.float32)

    # Shift-and-add over the HZ*WZ taps.  All offsets are static, every
    # slice stays in bounds (off + w_out <= L by construction), and the
    # only positions that pick up "wrapped-row" garbage are ones the
    # wrapper discards (q >= WO).
    for u in range(hz):
        for v in range(wz):
            t = u * wz + v
            off = u * wx + v
            acc = acc + lax.slice(g, (0, t, off), (bsz, t + 1, off + w_out))

    o_ref[...] = (acc * out_scale).astype(o_ref.dtype)


def _pick_batch_block(n, per_image_vmem_bytes, budget_bytes):
    """Largest divisor of n under the VMEM budget, keeping >= 2 grid steps."""
    cap = max(1, budget_bytes // max(per_image_vmem_bytes, 1))
    best = 1
    for b in range(1, n + 1):
        if n % b != 0 or b > cap:
            continue
        if n // b < 2 and n != 1:
            continue                      # keep both v7x TensorCores busy
        best = b
    return best


def siamfc_forward(z, x, out_scale=0.001, *, vmem_budget_bytes=12 << 20):
    """Pallas implementation of SiamFC.forward(z, x) for the standard nz == nx case."""
    nz, cz, hz, wz = z.shape
    nx, c, hx, wx = x.shape
    # TODO(synk): nz != nx grouped/broadcast path of F.conv2d(groups=nz) is not implemented.
    assert nz == nx and cz == c, "kernel implements the standard nz == nx case"

    ho, wo = hx - hz + 1, wx - wz + 1
    t = hz * wz                       # number of taps
    l = hx * wx                       # flattened search positions
    off_max = (hz - 1) * wx + (wz - 1)
    w_out = l - off_max               # = (ho - 1) * wx + wo

    # --- wrapper-side layout (free reshapes) + bf16 streaming ------------
    # z2d[n, u*wz+v, c] = z[n, c, u, v];  x2d[n, c, r*wx+s] = x[n, c, r, s]
    z2d = jnp.transpose(z.reshape(nz, c, t), (0, 2, 1)).astype(jnp.bfloat16)
    x2d = x.reshape(nx, c, l).astype(jnp.bfloat16)

    # Batch blocking: a few MB per step, but stay inside a conservative VMEM
    # budget (double-buffered inputs/outputs + the in-kernel f32 G slab).
    per_image = (2 * (c * l * 2)            # x block, double-buffered, bf16
                 + 2 * (t * c * 2)          # z block
                 + 2 * (w_out * 4)          # output block
                 + t * l * 4                # G = einsum result (f32)
                 + w_out * 4)               # accumulator
    b_blk = _pick_batch_block(nx, per_image, vmem_budget_bytes)
    grid = (nx // b_blk,)

    kernel = functools.partial(_siamfc_kernel, hz=hz, wz=wz, wx=wx,
                               w_out=w_out, out_scale=out_scale)
    out_flat = pl.pallas_call(
        kernel,
        out_shape=jax.ShapeDtypeStruct((nx, 1, w_out), x.dtype),
        grid=grid,
        in_specs=[
            pl.BlockSpec((b_blk, t, c), lambda n: (n, 0, 0)),
            pl.BlockSpec((b_blk, c, l), lambda n: (n, 0, 0)),
        ],
        out_specs=pl.BlockSpec((b_blk, 1, w_out), lambda n: (n, 0, 0)),
        compiler_params=pltpu.CompilerParams(
            dimension_semantics=("parallel",)),
    )(z2d, x2d)

    # Unpack flat input-row-major coords -> (N, 1, HO, WO).  Positions with
    # q >= WO (row-wrap garbage) are discarded here.  Output is tiny, so
    # these XLA ops are negligible HBM traffic.
    out_rows = jnp.pad(out_flat[:, 0, :], ((0, 0), (0, ho * wx - w_out)))
    out = out_rows.reshape(nx, ho, wx)[:, :, :wo]
    return out.reshape(nx, 1, ho, wo)


def _reference(z, x, out_scale=0.001):
    # Mirrors the PyTorch grouped conv2d exactly (f32, highest precision).
    nz, c, hz, wz = z.shape
    nx = x.shape[0]
    h, w = x.shape[2], x.shape[3]
    x_r = x.reshape(-1, nz * c, h, w)
    out = lax.conv_general_dilated(
        x_r, z, window_strides=(1, 1), padding="VALID",
        dimension_numbers=("NCHW", "OIHW", "NCHW"),
        feature_group_count=nz,
        precision=lax.Precision.HIGHEST,
    )
    out = out.reshape(nx, -1, out.shape[-2], out.shape[-1])
    return out * out_scale


if __name__ == "__main__":
    key = jax.random.PRNGKey(0)
    kz, kx = jax.random.split(key)

    # Small shapes consistent with SiamFC: exemplar 6x6, search 16x16.
    nz = nx = 2
    c = 4
    z = jax.random.normal(kz, (nz, c, 6, 6), dtype=jnp.float32)
    x = jax.random.normal(kx, (nx, c, 16, 16), dtype=jnp.float32)

    siamfc = jax.jit(siamfc_forward)
    out = jax.block_until_ready(siamfc(z, x))

    ref = _reference(z, x)
    assert out.shape == ref.shape == (nx, 1, 11, 11), out.shape
    # Tolerance loosened vs. a pure-f32 path: inputs are streamed as bf16
    # (K = C*HZ*WZ = 144 terms, f32 accumulation) per the perf review.
    assert jnp.allclose(out, ref, atol=2e-3, rtol=2e-2), (
        float(jnp.max(jnp.abs(out - ref)))
    )

    print("KERNEL_OK")
</pallas_src>

<mosaic_0001>
module attributes {stable_mosaic.version = 11 : i64} {
  func.func @_siamfc_kernel(%arg0: i32, %arg1: memref<1x36x4xbf16, #tpu.memory_space<vmem>>, %arg2: memref<1x4x256xbf16, #tpu.memory_space<vmem>>, %arg3: memref<1x1x171xf32, #tpu.memory_space<vmem>>) attributes {dimension_semantics = [#tpu.dimension_semantics<parallel>], iteration_bounds = array<i64: 2>, scalar_prefetch = 0 : i64, scratch_operands = 0 : i64, tpu.core_type = #tpu.core_type<tc>, window_params = [{transform_indices = @transform_0, window_bounds = array<i64: 1, 36, 4>}, {transform_indices = @transform_1, window_bounds = array<i64: 1, 4, 256>}, {transform_indices = @transform_2, window_bounds = array<i64: 1, 1, 171>}]} {
    %c0 = arith.constant 0 : index
    %c0_0 = arith.constant 0 : index
    %c0_1 = arith.constant 0 : index
    %0 = vector.load %arg1[%c0, %c0_0, %c0_1] : memref<1x36x4xbf16, #tpu.memory_space<vmem>>, vector<1x36x4xbf16>
    %c0_2 = arith.constant 0 : index
    %c0_3 = arith.constant 0 : index
    %c0_4 = arith.constant 0 : index
    %1 = vector.load %arg2[%c0_2, %c0_3, %c0_4] : memref<1x4x256xbf16, #tpu.memory_space<vmem>>, vector<1x4x256xbf16>
    "tpu.trace_start"() <{level = 10 : i32, message = "btc,bcl->btl"}> : () -> ()
    %cst = arith.constant dense<0.000000e+00> : vector<1x36x256xf32>
    %2 = tpu.matmul %0, %1, %cst {dimension_numbers = #tpu.dot_dimension_numbers<[2], [1], [1], [2], [0, 0, 0, 1, 1, 2], [0], [0]>} : vector<1x36x4xbf16>, vector<1x4x256xbf16>, vector<1x36x256xf32> -> vector<1x36x256xf32>
    %cst_5 = arith.constant 0.000000e+00 : f32
    "tpu.trace_stop"() : () -> ()
    %3 = vector.broadcast %cst_5 : f32 to vector<1x1x171xf32>
    %4 = vector.extract_strided_slice %2 {offsets = [0, 0, 0], sizes = [1, 1, 171], strides = [1, 1, 1]} : vector<1x36x256xf32> to vector<1x1x171xf32>
    %5 = arith.addf %3, %4 : vector<1x1x171xf32>
    %6 = vector.extract_strided_slice %2 {offsets = [0, 1, 1], sizes = [1, 1, 171], strides = [1, 1, 1]} : vector<1x36x256xf32> to vector<1x1x171xf32>
    %7 = arith.addf %5, %6 : vector<1x1x171xf32>
    %8 = vector.extract_strided_slice %2 {offsets = [0, 2, 2], sizes = [1, 1, 171], strides = [1, 1, 1]} : vector<1x36x256xf32> to vector<1x1x171xf32>
    %9 = arith.addf %7, %8 : vector<1x1x171xf32>
    %10 = vector.extract_strided_slice %2 {offsets = [0, 3, 3], sizes = [1, 1, 171], strides = [1, 1, 1]} : vector<1x36x256xf32> to vector<1x1x171xf32>
    %11 = arith.addf %9, %10 : vector<1x1x171xf32>
    %12 = vector.extract_strided_slice %2 {offsets = [0, 4, 4], sizes = [1, 1, 171], strides = [1, 1, 1]} : vector<1x36x256xf32> to vector<1x1x171xf32>
    %13 = arith.addf %11, %12 : vector<1x1x171xf32>
    %14 = vector.extract_strided_slice %2 {offsets = [0, 5, 5], sizes = [1, 1, 171], strides = [1, 1, 1]} : vector<1x36x256xf32> to vector<1x1x171xf32>
    %15 = arith.addf %13, %14 : vector<1x1x171xf32>
    %16 = vector.extract_strided_slice %2 {offsets = [0, 6, 16], sizes = [1, 1, 171], strides = [1, 1, 1]} : vector<1x36x256xf32> to vector<1x1x171xf32>
    %17 = arith.addf %15, %16 : vector<1x1x171xf32>
    %18 = vector.extract_strided_slice %2 {offsets = [0, 7, 17], sizes = [1, 1, 171], strides = [1, 1, 1]} : vector<1x36x256xf32> to vector<1x1x171xf32>
    %19 = arith.addf %17, %18 : vector<1x1x171xf32>
    %20 = vector.extract_strided_slice %2 {offsets = [0, 8, 18], sizes = [1, 1, 171], strides = [1, 1, 1]} : vector<1x36x256xf32> to vector<1x1x171xf32>
    %21 = arith.addf %19, %20 : vector<1x1x171xf32>
    %22 = vector.extract_strided_slice %2 {offsets = [0, 9, 19], sizes = [1, 1, 171], strides = [1, 1, 1]} : vector<1x36x256xf32> to vector<1x1x171xf32>
    %23 = arith.addf %21, %22 : vector<1x1x171xf32>
    %24 = vector.extract_strided_slice %2 {offsets = [0, 10, 20], sizes = [1, 1, 171], strides = [1, 1, 1]} : vector<1x36x256xf32> to vector<1x1x171xf32>
    %25 = arith.addf %23, %24 : vector<1x1x171xf32>
    %26 = vector.extract_strided_slice %2 {offsets = [0, 11, 21], sizes = [1, 1, 171], strides = [1, 1, 1]} : vector<1x36x256xf32> to vector<1x1x171xf32>
    %27 = arith.addf %25, %26 : vector<1x1x171xf32>
    %28 = vector.extract_strided_slice %2 {offsets = [0, 12, 32], sizes = [1, 1, 171], strides = [1, 1, 1]} : vector<1x36x256xf32> to vector<1x1x171xf32>
    %29 = arith.addf %27, %28 : vector<1x1x171xf32>
    %30 = vector.extract_strided_slice %2 {offsets = [0, 13, 33], sizes = [1, 1, 171], strides = [1, 1, 1]} : vector<1x36x256xf32> to vector<1x1x171xf32>
    %31 = arith.addf %29, %30 : vector<1x1x171xf32>
    %32 = vector.extract_strided_slice %2 {offsets = [0, 14, 34], sizes = [1, 1, 171], strides = [1, 1, 1]} : vector<1x36x256xf32> to vector<1x1x171xf32>
    %33 = arith.addf %31, %32 : vector<1x1x171xf32>
    %34 = vector.extract_strided_slice %2 {offsets = [0, 15, 35], sizes = [1, 1, 171], strides = [1, 1, 1]} : vector<1x36x256xf32> to vector<1x1x171xf32>
    %35 = arith.addf %33, %34 : vector<1x1x171xf32>
    %36 = vector.extract_strided_slice %2 {offsets = [0, 16, 36], sizes = [1, 1, 171], strides = [1, 1, 1]} : vector<1x36x256xf32> to vector<1x1x171xf32>
    %37 = arith.addf %35, %36 : vector<1x1x171xf32>
    %38 = vector.extract_strided_slice %2 {offsets = [0, 17, 37], sizes = [1, 1, 171], strides = [1, 1, 1]} : vector<1x36x256xf32> to vector<1x1x171xf32>
    %39 = arith.addf %37, %38 : vector<1x1x171xf32>
    %40 = vector.extract_strided_slice %2 {offsets = [0, 18, 48], sizes = [1, 1, 171], strides = [1, 1, 1]} : vector<1x36x256xf32> to vector<1x1x171xf32>
    %41 = arith.addf %39, %40 : vector<1x1x171xf32>
    %42 = vector.extract_strided_slice %2 {offsets = [0, 19, 49], sizes = [1, 1, 171], strides = [1, 1, 1]} : vector<1x36x256xf32> to vector<1x1x171xf32>
    %43 = arith.addf %41, %42 : vector<1x1x171xf32>
    %44 = vector.extract_strided_slice %2 {offsets = [0, 20, 50], sizes = [1, 1, 171], strides = [1, 1, 1]} : vector<1x36x256xf32> to vector<1x1x171xf32>
    %45 = arith.addf %43, %44 : vector<1x1x171xf32>
    %46 = vector.extract_strided_slice %2 {offsets = [0, 21, 51], sizes = [1, 1, 171], strides = [1, 1, 1]} : vector<1x36x256xf32> to vector<1x1x171xf32>
    %47 = arith.addf %45, %46 : vector<1x1x171xf32>
    %48 = vector.extract_strided_slice %2 {offsets = [0, 22, 52], sizes = [1, 1, 171], strides = [1, 1, 1]} : vector<1x36x256xf32> to vector<1x1x171xf32>
    %49 = arith.addf %47, %48 : vector<1x1x171xf32>
    %50 = vector.extract_strided_slice %2 {offsets = [0, 23, 53], sizes = [1, 1, 171], strides = [1, 1, 1]} : vector<1x36x256xf32> to vector<1x1x171xf32>
    %51 = arith.addf %49, %50 : vector<1x1x171xf32>
    %52 = vector.extract_strided_slice %2 {offsets = [0, 24, 64], sizes = [1, 1, 171], strides = [1, 1, 1]} : vector<1x36x256xf32> to vector<1x1x171xf32>
    %53 = arith.addf %51, %52 : vector<1x1x171xf32>
    %54 = vector.extract_strided_slice %2 {offsets = [0, 25, 65], sizes = [1, 1, 171], strides = [1, 1, 1]} : vector<1x36x256xf32> to vector<1x1x171xf32>
    %55 = arith.addf %53, %54 : vector<1x1x171xf32>
    %56 = vector.extract_strided_slice %2 {offsets = [0, 26, 66], sizes = [1, 1, 171], strides = [1, 1, 1]} : vector<1x36x256xf32> to vector<1x1x171xf32>
    %57 = arith.addf %55, %56 : vector<1x1x171xf32>
    %58 = vector.extract_strided_slice %2 {offsets = [0, 27, 67], sizes = [1, 1, 171], strides = [1, 1, 1]} : vector<1x36x256xf32> to vector<1x1x171xf32>
    %59 = arith.addf %57, %58 : vector<1x1x171xf32>
    %60 = vector.extract_strided_slice %2 {offsets = [0, 28, 68], sizes = [1, 1, 171], strides = [1, 1, 1]} : vector<1x36x256xf32> to vector<1x1x171xf32>
    %61 = arith.addf %59, %60 : vector<1x1x171xf32>
    %62 = vector.extract_strided_slice %2 {offsets = [0, 29, 69], sizes = [1, 1, 171], strides = [1, 1, 1]} : vector<1x36x256xf32> to vector<1x1x171xf32>
    %63 = arith.addf %61, %62 : vector<1x1x171xf32>
    %64 = vector.extract_strided_slice %2 {offsets = [0, 30, 80], sizes = [1, 1, 171], strides = [1, 1, 1]} : vector<1x36x256xf32> to vector<1x1x171xf32>
    %65 = arith.addf %63, %64 : vector<1x1x171xf32>
    %66 = vector.extract_strided_slice %2 {offsets = [0, 31, 81], sizes = [1, 1, 171], strides = [1, 1, 1]} : vector<1x36x256xf32> to vector<1x1x171xf32>
    %67 = arith.addf %65, %66 : vector<1x1x171xf32>
    %68 = vector.extract_strided_slice %2 {offsets = [0, 32, 82], sizes = [1, 1, 171], strides = [1, 1, 1]} : vector<1x36x256xf32> to vector<1x1x171xf32>
    %69 = arith.addf %67, %68 : vector<1x1x171xf32>
    %70 = vector.extract_strided_slice %2 {offsets = [0, 33, 83], sizes = [1, 1, 171], strides = [1, 1, 1]} : vector<1x36x256xf32> to vector<1x1x171xf32>
    %71 = arith.addf %69, %70 : vector<1x1x171xf32>
    %72 = vector.extract_strided_slice %2 {offsets = [0, 34, 84], sizes = [1, 1, 171], strides = [1, 1, 1]} : vector<1x36x256xf32> to vector<1x1x171xf32>
    %73 = arith.addf %71, %72 : vector<1x1x171xf32>
    %74 = vector.extract_strided_slice %2 {offsets = [0, 35, 85], sizes = [1, 1, 171], strides = [1, 1, 1]} : vector<1x36x256xf32> to vector<1x1x171xf32>
    %75 = arith.addf %73, %74 : vector<1x1x171xf32>
    %cst_6 = arith.constant 1.000000e-03 : f32
    %76 = vector.broadcast %cst_6 : f32 to vector<1x1x171xf32>
    %77 = arith.mulf %75, %76 : vector<1x1x171xf32>
    %c0_7 = arith.constant 0 : index
    %c0_8 = arith.constant 0 : index
    %c0_9 = arith.constant 0 : index
    %78 = vector.load %arg3[%c0_7, %c0_8, %c0_9] : memref<1x1x171xf32, #tpu.memory_space<vmem>>, vector<1x1x171xf32>
    tpu.vector_store %arg3[%c0_7, %c0_8, %c0_9], %77 {strides = array<i32>} : memref<1x1x171xf32, #tpu.memory_space<vmem>>, vector<1x1x171xf32>,
    return
  }
  func.func @transform_0(%arg0: i32) -> (i32, i32, i32) {
    %c0_i32 = arith.constant 0 : i32
    %c0_i32_0 = arith.constant 0 : i32
    %c0_i32_1 = arith.constant 0 : i32
    return %arg0, %c0_i32, %c0_i32_0 : i32, i32, i32
  }
  func.func @transform_1(%arg0: i32) -> (i32, i32, i32) {
    %c0_i32 = arith.constant 0 : i32
    %c0_i32_0 = arith.constant 0 : i32
    %c0_i32_1 = arith.constant 0 : i32
    return %arg0, %c0_i32, %c0_i32_0 : i32, i32, i32
  }
  func.func @transform_2(%arg0: i32) -> (i32, i32, i32) {
    %c0_i32 = arith.constant 0 : i32
    %c0_i32_0 = arith.constant 0 : i32
    %c0_i32_1 = arith.constant 0 : i32
    return %arg0, %c0_i32, %c0_i32_0 : i32, i32, i32
  }
}

</mosaic_0001>

<llo_original>
// kernel: siamfc_forward.1
$region0: #{siamfc_forward.1}
  #allocation0 [shape = 'u32[]', space=smem, size = 0x4, offset = 0x4, fixed_abs, tag = 'smem constant byte address 0x4 - core index']
  #allocation1 [shape = 'u32[144,128]{1,0:T(1,128)}', space=vmem, size = 0x12000, scoped, tag = 'internal scratch']
  %s0 = inlined_call_operand.vmem [shape: bf16[2,36,4], index: 0, kind: input, shape index: {}]
  %s1 = inlined_call_operand.vmem [shape: bf16[2,4,256], index: 1, kind: input, shape index: {}]
  %s2 = inlined_call_operand.vmem [shape: f32[2,1,171], index: 2, kind: output, shape index: {}]
  %s3 = sld [smem:[#allocation0]]
  $region41: #{siamfc_forward.1} parent=0
    _
  %s5 = ssub.s32 1, %s3
  %s6 = scalar_select 0, %s5, %s3
  loop: start=0, step=1, limit=4
  $region2: #{siamfc_forward.1} parent=0 // loop_pre_header
    _
  $region3: #{siamfc_forward.1} parent=0 // loop_header
    %s8 = sphi 0, %s12
    %p9 = scmp.ge.s32.totalorder %s8, 4
    %s18 = sphi 0, %s20
    %s21 = sphi 0, %s18
    %s22 = sphi 0, %s21
    %s38 = sphi 0, %s22
    %s44 = sphi 0, %s46
    %s47 = sphi 0, %s44
    %s48 = sphi 0, %s47
    %s64 = sphi 0, %s48
    %s70 = sphi 0, %s72
    %s73 = sphi 0, %s70
    %s74 = sphi 0, %s73
    %s90 = sphi 0, %s74
  $region4: #{siamfc_forward.1} parent=0 // loop_header_branch
    %11 = sbr.rel (%p9) target = $region8
  $region5: #{siamfc_forward.1} parent=0 // loop_body
    %s13 = ssub.s32 %s8, 1
    %s14 = ssub.s32 %s8, 2
    %s15 = sadd.s32 %s8, 1
    %s16 = ssub.s32 %s8, %s15
    %p17 = scmp.eq.s32.totalorder %s16, 0
    %s19 = sadd.s32 %s18, 1
    %s20 = scalar_select %p17, %s18, %s19
    %p23 = pneg %p17
    %p24 = scmp.eq.s32.totalorder %s8, 1
    %p25 = por %p23, %p24
    %p26 = scmp.ne.s32.totalorder %s18, %s21
    %p27 = scmp.eq.s32.totalorder %s8, 0
    %p28 = por %p26, %p27
    %p29 = scmp.ne.s32.totalorder %s18, %s21
    %p30 = scmp.eq.s32.totalorder %s13, 1
    %p31 = por %p29, %p30
    %p32 = scmp.ne.s32.totalorder %s21, %s22
    %p33 = scmp.eq.s32.totalorder %s13, 0
    %p34 = por %p32, %p33
    %p35 = scmp.ne.s32.totalorder %s21, %s22
    %p36 = scmp.eq.s32.totalorder %s14, 1
    %p37 = por %p35, %p36
    %p39 = scmp.ne.s32.totalorder %s22, %s38
    %p40 = scmp.eq.s32.totalorder %s14, 0
    %p41 = por %p39, %p40
    %s42 = ssub.s32 %s8, %s15
    %p43 = scmp.eq.s32.totalorder %s42, 0
    %s45 = sadd.s32 %s44, 1
    %s46 = scalar_select %p43, %s44, %s45
    %p49 = pneg %p43
    %p50 = scmp.eq.s32.totalorder %s8, 1
    %p51 = por %p49, %p50
    %p52 = scmp.ne.s32.totalorder %s44, %s47
    %p53 = scmp.eq.s32.totalorder %s8, 0
    %p54 = por %p52, %p53
    %p55 = scmp.ne.s32.totalorder %s44, %s47
    %p56 = scmp.eq.s32.totalorder %s13, 1
    %p57 = por %p55, %p56
    %p58 = scmp.ne.s32.totalorder %s47, %s48
    %p59 = scmp.eq.s32.totalorder %s13, 0
    %p60 = por %p58, %p59
    %p61 = scmp.ne.s32.totalorder %s47, %s48
    %p62 = scmp.eq.s32.totalorder %s14, 1
    %p63 = por %p61, %p62
    %p65 = scmp.ne.s32.totalorder %s48, %s64
    %p66 = scmp.eq.s32.totalorder %s14, 0
    %p67 = por %p65, %p66
    %s68 = ssub.s32 %s8, %s15
    %p69 = scmp.eq.s32.totalorder %s68, 0
    %s71 = sadd.s32 %s70, 1
    %s72 = scalar_select %p69, %s70, %s71
    %p75 = pneg %p69
    %p76 = scmp.eq.s32.totalorder %s8, 1
    %p77 = por %p75, %p76
    %p78 = scmp.ne.s32.totalorder %s70, %s73
    %p79 = scmp.eq.s32.totalorder %s8, 0
    %p80 = por %p78, %p79
    %p81 = scmp.ne.s32.totalorder %s70, %s73
    %p82 = scmp.eq.s32.totalorder %s13, 1
    %p83 = por %p81, %p82
    %p84 = scmp.ne.s32.totalorder %s73, %s74
    %p85 = scmp.eq.s32.totalorder %s13, 0
    %p86 = por %p84, %p85
    %p87 = scmp.ne.s32.totalorder %s73, %s74
    %p88 = scmp.eq.s32.totalorder %s14, 1
    %p89 = por %p87, %p88
    %p91 = scmp.ne.s32.totalorder %s74, %s90
    %p92 = scmp.eq.s32.totalorder %s14, 0
    %p93 = por %p91, %p92
    %p94 = scmp.le.s32.totalorder 1, %s8
    %p95 = scmp.lt.s32.totalorder %s8, 3
    %p96 = pnand %p94, %p95
    %p97 = pneg %p96
    // Predicated region
    $region9: #{siamfc_forward.1} parent=5 // pred_check
      _
    $region10: #{siamfc_forward.1} parent=5 // pred_check_branch
      %99 = sbr.rel (%p96) target = $region12
    $region11: #{siamfc_forward.1} parent=5 // pred_region
      %s100 = ssub.s32 %s8, 1
    $region12: #{siamfc_forward.1} parent=5 // pred_fallthru
      _
    %p101 = scmp.lt.s32.totalorder %s8, 2
    // Predicated region
    $region13: #{siamfc_forward.1} parent=5 // pred_check
      %p102 = pneg %p101
    $region14: #{siamfc_forward.1} parent=5 // pred_check_branch
      %104 = sbr.rel (%p102) target = $region16
    $region15: #{siamfc_forward.1} parent=5 // pred_region
      // Predicated region
      $region17: #{siamfc_forward.1} parent=15 // pred_check
        %p105 = pneg %p28
      $region18: #{siamfc_forward.1} parent=15 // pred_check_branch
        %107 = sbr.rel (%p105) target = $region20
      $region19: #{siamfc_forward.1} parent=15 // pred_region
        %p108 = scmp.lt.s32.totalorder %s8, 1
        %s109 = scalar_select %p108, %s8, 1
        %s110 = smul.addr %s109, 5
        %s111 = smul.addr %s110, 4
        %s112 = scalar_lea.vmem %s0, %s111
      $region20: #{siamfc_forward.1} parent=15 // pred_fallthru
        _
      // Predicated region
      $region21: #{siamfc_forward.1} parent=15 // pred_check
        %p113 = pneg %p54
      $region22: #{siamfc_forward.1} parent=15 // pred_check_branch
        %115 = sbr.rel (%p113) target = $region24
      $region23: #{siamfc_forward.1} parent=15 // pred_region
        %p116 = scmp.lt.s32.totalorder %s8, 1
        %s117 = scalar_select %p116, %s8, 1
        %s118 = smul.addr %s117, 2
        %s119 = smul.addr %s118, 2
        %s120 = scalar_lea.vmem %s1, %s119
      $region24: #{siamfc_forward.1} parent=15 // pred_fallthru
        _
    $region16: #{siamfc_forward.1} parent=5 // pred_fallthru
      _
    %p121 = scmp.le.s32.totalorder 1, %s8
    %p122 = scmp.lt.s32.totalorder %s8, 3
    %p123 = pnand %p121, %p122
    %p124 = pneg %p123
    // Predicated region
    $region25: #{siamfc_forward.1} parent=5 // pred_check
      _
    $region26: #{siamfc_forward.1} parent=5 // pred_check_branch
      %126 = sbr.rel (%p123) target = $region28
    $region27: #{siamfc_forward.1} parent=5 // pred_region
      %s127 = ssub.s32 %s8, 1
      %p128 = scmp.lt.s32.totalorder %s13, 1
      %s129 = scalar_select %p128, %s13, 1
      %s130 = smul.addr %s129, 5
      %s131 = smul.addr %s130, 4
      %s132 = scalar_lea.vmem %s0, %s131
      %p133 = pneg %p34
      %p134 = pneg %p31
      %p135 = scmp.lt.s32.totalorder %s13, 1
      %s136 = scalar_select %p135, %s13, 1
      %s137 = smul.addr %s136, 2
      %s138 = smul.addr %s137, 2
      %s139 = scalar_lea.vmem %s1, %s138
      %p140 = pneg %p60
      %p141 = pneg %p57
      %p142 = pneg %p86
      %p143 = pneg %p83
      %p144 = scmp.lt.s32.totalorder %s13, 1
      %s145 = scalar_select %p144, %s13, 1
      %s146 = smul.addr %s145, 2
      %s147 = scalar_lea.vmem %s2, %s146
      %p148 = scmp.lt.s32.totalorder %s13, 1
      %s149 = scalar_select %p148, %s13, 1
      %s150 = smul.addr %s149, 5
      %s151 = smul.addr %s150, 4
      %s152 = scalar_lea.vmem %s0, %s151
      %p153 = scmp.lt.s32.totalorder %s13, 1
      %s154 = scalar_select %p153, %s13, 1
      %s155 = smul.addr %s154, 2
      %s156 = smul.addr %s155, 2
      %s157 = scalar_lea.vmem %s1, %s156
      %p158 = scmp.lt.s32.totalorder %s13, 1
      %s159 = scalar_select %p158, %s13, 1
      %s160 = smul.addr %s159, 2
      %s161 = scalar_lea.vmem %s2, %s160
      %v163 = vld [vmem:[%s152] sm:$0xf]
      %v164 = vld [vmem:[%s152 + $0x4] sm:$0xf]
      %v165 = vld [vmem:[%s152 + $0x8] sm:$0xf]
      %v166 = vld [vmem:[%s152 + $0xc] sm:$0xf]
      %v167 = vld [vmem:[%s152 + $0x10] sm:$0x3]
      %v168 = vld [vmem:[%s157] sm:$0xf]
      %v174 = vunpack.c.l.b16 %v163
      %v175 = vunpack.c.l.b16 %v164
      %v176 = vunpack.c.l.b16 %v165
      %v177 = vunpack.c.l.b16 %v166
      %v178 = vunpack.c.l.b16 %v167
      %v179 = vpack.c.b16 %v175, %v174
      %v180 = vpack.c.b16 %v177, %v176
      %v181 = vpack.c.b16 %v178, %v178
      %v184 = vunpack.c.l.s4 1983009808
      %v185 = vunpack.c.0.s8 %v184
      %v186 = vlaneseq
      %v187 = vshrl.u32 %v186, 7
      %v188 = vsub.s32 %v185, %v187
      %v189 = vrot.slane %v168, %v188
      %v190 = vcombine.high %v189, %v189
      %vm191 = vcmask 31744
      %v193 = vsel %vm191, %v179, 0
      %v196 = vsel %vm191, %v180, 0
      %v199 = vsel %vm191, %v181, 0
      %vm201 = vcmask 1041408
      %v203 = vsel %vm201, %v189, 0
      %v206 = vsel %vm201, %v190, 0
      %208 = vmatprep.subr.bf16.mxu0 %v206
      %209 = vmatpush1.bf16.msra.mxu0 %v203
      %210 = vmatprep.subr.bf16.mxu0 0
      %211 = vmatpush1.bf16.msra.mxu0 0
      %212 = vmatprep.subr.bf16.mxu0 0
      %213 = vmatpush1.bf16.msra.mxu0 0
      %214 = vmatprep.subr.bf16.mxu0 0
      %215 = vmatpush1.bf16.msra.mxu0 0
      %216 = vmatprep.subr.bf16.mxu0 0
      %217 = vmatpush1.bf16.msra.mxu0 0
      %218 = vmatprep.subr.bf16.mxu0 0
      %219 = vmatpush1.bf16.msra.mxu0 0
      %220 = vmatprep.subr.bf16.mxu0 0
      %221 = vmatpush1.bf16.msra.mxu0 0
      %222 = vmatprep.subr.bf16.mxu0 0
      %223 = vmatpush1.bf16.msra.mxu0 0
      %224 = vmatprep.subr.bf16.mxu0 0
      %225 = vmatpush1.bf16.msra.mxu0 0
      %226 = vmatprep.subr.bf16.mxu0 0
      %227 = vmatpush1.bf16.msra.mxu0 0
      %228 = vmatprep.subr.bf16.mxu0 0
      %229 = vmatpush1.bf16.msra.mxu0 0
      %230 = vmatprep.subr.bf16.mxu0 0
      %231 = vmatpush1.bf16.msra.mxu0 0
      %232 = vmatprep.subr.bf16.mxu0 0
      %233 = vmatpush1.bf16.msra.mxu0 0
      %234 = vmatprep.subr.bf16.mxu0 0
      %235 = vmatpush1.bf16.msra.mxu0 0
      %236 = vmatprep.subr.bf16.mxu0 0
      %237 = vmatpush1.bf16.msra.mxu0 0
      %238 = vmatprep.subr.bf16.mxu0 0
      %239 = vmatpush1.bf16.msra.mxu0 0
      %240 = vmatprep.mubr.bf16.mxu0 0
      %241 = vmatmul.mubr.bf16.gmra.mrb[0].mxu0 %v193
      %v242 = vpop.f32.mrb[0].mxu0
      %v243 = vadd.f32 0.0, %v242
      %v244 = vpop.f32.mrb[0].mxu0
      %v245 = vadd.f32 0.0, %v244
      %v246 = vpop.f32.mrb[0].mxu0
      %v247 = vadd.f32 0.0, %v246
      %v248 = vpop.f32.mrb[0].mxu0
      %v249 = vadd.f32 0.0, %v248
      %250 = vmatprep.mubr.bf16.mxu0 0
      %251 = vmatmul.mubr.bf16.gmra.mrb[0].mxu0 %v196
      %v252 = vpop.f32.mrb[0].mxu0
      %v253 = vadd.f32 0.0, %v252
      %v254 = vpop.f32.mrb[0].mxu0
      %v255 = vadd.f32 0.0, %v254
      %v256 = vpop.f32.mrb[0].mxu0
      %v257 = vadd.f32 0.0, %v256
      %v258 = vpop.f32.mrb[0].mxu0
      %v259 = vadd.f32 0.0, %v258
      %260 = vmatprep.mubr.bf16.mxu0 0
      %261 = vmatmul.mubr.bf16.gmra.mrb[0].mxu0 %v199
      %v262 = vpop.f32.mrb[0].mxu0
      %v263 = vadd.f32 0.0, %v262
      %v264 = vpop.f32.mrb[0].mxu0
      %v265 = vadd.f32 0.0, %v264
      %v266 = vpop.f32.mrb[0].mxu0
      %v267 = vpop.f32.mrb[0].mxu0
      %268 = vdwg.mxu0
      %v269 = vadd.f32 %v243, 0.0
      %v270 = vadd.f32 %v245, 0.0
      %v273 = vrot.slane %v243, 1
      %v274 = vrot.slane %v245, 1
      %275 = vrot.lane.b32.xlu0 %v273, 127
      %v276 = vpop.permute.xlu0 %275
      %277 = vrot.lane.b32.xlu0 %v274, 127
      %v278 = vpop.permute.xlu0 %277
      %vm279 = vcmask 1039360
      %v280 = vsel %vm279, %v276, %v278
      %v283 = vadd.f32 %v269, %v280
      %v284 = vadd.f32 %v270, %v278
      %v285 = vrot.slane %v243, 2
      %v286 = vrot.slane %v245, 2
      %287 = vrot.lane.b32.xlu0 %v285, 126
      %v288 = vpop.permute.xlu0 %287
      %289 = vrot.lane.b32.xlu0 %v286, 126
      %v290 = vpop.permute.xlu0 %289
      %vm291 = vcmask 1031168
      %v292 = vsel %vm291, %v288, %v290
      %v295 = vadd.f32 %v283, %v292
      %v296 = vadd.f32 %v284, %v290
      %v297 = vrot.slane %v243, 3
      %v298 = vrot.slane %v245, 3
      %299 = vrot.lane.b32.xlu0 %v297, 125
      %v300 = vpop.permute.xlu0 %299
      %301 = vrot.lane.b32.xlu0 %v298, 125
      %v302 = vpop.permute.xlu0 %301
      %vm303 = vcmask 1022976
      %v304 = vsel %vm303, %v300, %v302
      %v307 = vadd.f32 %v295, %v304
      %v308 = vadd.f32 %v296, %v302
      %v309 = vrot.slane %v243, 4
      %v310 = vrot.slane %v245, 4
      %311 = vrot.lane.b32.xlu0 %v309, 124
      %v312 = vpop.permute.xlu0 %311
      %313 = vrot.lane.b32.xlu0 %v310, 124
      %v314 = vpop.permute.xlu0 %313
      %vm315 = vcmask 1014784
      %v316 = vsel %vm315, %v312, %v314
      %v319 = vadd.f32 %v307, %v316
      %v320 = vadd.f32 %v308, %v314
      %v321 = vrot.slane %v243, 5
      %v322 = vrot.slane %v245, 5
      %323 = vrot.lane.b32.xlu0 %v321, 123
      %v324 = vpop.permute.xlu0 %323
      %325 = vrot.lane.b32.xlu0 %v322, 123
      %v326 = vpop.permute.xlu0 %325
      %vm327 = vcmask 1006592
      %v328 = vsel %vm327, %v324, %v326
      %v331 = vadd.f32 %v319, %v328
      %v332 = vadd.f32 %v320, %v326
      %v333 = vrot.slane %v243, 6
      %v334 = vrot.slane %v245, 6
      %335 = vrot.lane.b32.xlu0 %v333, 112
      %v336 = vpop.permute.xlu0 %335
      %337 = vrot.lane.b32.xlu0 %v334, 112
      %v338 = vpop.permute.xlu0 %337
      %vm339 = vcmask 916480
      %v340 = vsel %vm339, %v336, %v338
      %v343 = vadd.f32 %v331, %v340
      %v344 = vadd.f32 %v332, %v338
      %v345 = vrot.slane %v243, 7
      %v346 = vrot.slane %v245, 7
      %347 = vrot.lane.b32.xlu0 %v345, 111
      %v348 = vpop.permute.xlu0 %347
      %349 = vrot.lane.b32.xlu0 %v346, 111
      %v350 = vpop.permute.xlu0 %349
      %vm351 = vcmask 908288
      %v352 = vsel %vm351, %v348, %v350
      %v355 = vadd.f32 %v343, %v352
      %v356 = vadd.f32 %v344, %v350
      %359 = vrot.lane.b32.xlu0 %v247, 110
      %v360 = vpop.permute.xlu0 %359
      %361 = vrot.lane.b32.xlu0 %v249, 110
      %v362 = vpop.permute.xlu0 %361
      %vm363 = vcmask 900096
      %v364 = vsel %vm363, %v360, %v362
      %v367 = vadd.f32 %v355, %v364
      %v368 = vadd.f32 %v356, %v362
      %v369 = vrot.slane %v247, 1
      %v370 = vrot.slane %v249, 1
      %371 = vrot.lane.b32.xlu0 %v369, 109
      %v372 = vpop.permute.xlu0 %371
      %373 = vrot.lane.b32.xlu0 %v370, 109
      %v374 = vpop.permute.xlu0 %373
      %vm375 = vcmask 891904
      %v376 = vsel %vm375, %v372, %v374
      %v379 = vadd.f32 %v367, %v376
      %v380 = vadd.f32 %v368, %v374
      %v381 = vrot.slane %v247, 2
      %v382 = vrot.slane %v249, 2
      %383 = vrot.lane.b32.xlu0 %v381, 108
      %v384 = vpop.permute.xlu0 %383
      %385 = vrot.lane.b32.xlu0 %v382, 108
      %v386 = vpop.permute.xlu0 %385
      %vm387 = vcmask 883712
      %v388 = vsel %vm387, %v384, %v386
      %v391 = vadd.f32 %v379, %v388
      %v392 = vadd.f32 %v380, %v386
      %v393 = vrot.slane %v247, 3
      %v394 = vrot.slane %v249, 3
      %395 = vrot.lane.b32.xlu0 %v393, 107
      %v396 = vpop.permute.xlu0 %395
      %397 = vrot.lane.b32.xlu0 %v394, 107
      %v398 = vpop.permute.xlu0 %397
      %vm399 = vcmask 875520
      %v400 = vsel %vm399, %v396, %v398
      %v403 = vadd.f32 %v391, %v400
      %v404 = vadd.f32 %v392, %v398
      %v405 = vrot.slane %v247, 4
      %v406 = vrot.slane %v249, 4
      %407 = vrot.lane.b32.xlu0 %v405, 96
      %v408 = vpop.permute.xlu0 %407
      %409 = vrot.lane.b32.xlu0 %v406, 96
      %v410 = vpop.permute.xlu0 %409
      %vm411 = vcmask 785408
      %v412 = vsel %vm411, %v408, %v410
      %v415 = vadd.f32 %v403, %v412
      %v416 = vadd.f32 %v404, %v410
      %v417 = vrot.slane %v247, 5
      %v418 = vrot.slane %v249, 5
      %419 = vrot.lane.b32.xlu0 %v417, 95
      %v420 = vpop.permute.xlu0 %419
      %421 = vrot.lane.b32.xlu0 %v418, 95
      %v422 = vpop.permute.xlu0 %421
      %vm423 = vcmask 777216
      %v424 = vsel %vm423, %v420, %v422
      %v427 = vadd.f32 %v415, %v424
      %v428 = vadd.f32 %v416, %v422
      %v429 = vrot.slane %v247, 6
      %v430 = vrot.slane %v249, 6
      %431 = vrot.lane.b32.xlu0 %v429, 94
      %v432 = vpop.permute.xlu0 %431
      %433 = vrot.lane.b32.xlu0 %v430, 94
      %v434 = vpop.permute.xlu0 %433
      %vm435 = vcmask 769024
      %v436 = vsel %vm435, %v432, %v434
      %v439 = vadd.f32 %v427, %v436
      %v440 = vadd.f32 %v428, %v434
      %v441 = vrot.slane %v247, 7
      %v442 = vrot.slane %v249, 7
      %443 = vrot.lane.b32.xlu0 %v441, 93
      %v444 = vpop.permute.xlu0 %443
      %445 = vrot.lane.b32.xlu0 %v442, 93
      %v446 = vpop.permute.xlu0 %445
      %vm447 = vcmask 760832
      %v448 = vsel %vm447, %v444, %v446
      %v451 = vadd.f32 %v439, %v448
      %v452 = vadd.f32 %v440, %v446
      %455 = vrot.lane.b32.xlu0 %v253, 92
      %v456 = vpop.permute.xlu0 %455
      %457 = vrot.lane.b32.xlu0 %v255, 92
      %v458 = vpop.permute.xlu0 %457
      %vm459 = vcmask 752640
      %v460 = vsel %vm459, %v456, %v458
      %v463 = vadd.f32 %v451, %v460
      %v464 = vadd.f32 %v452, %v458
      %v465 = vrot.slane %v253, 1
      %v466 = vrot.slane %v255, 1
      %467 = vrot.lane.b32.xlu0 %v465, 91
      %v468 = vpop.permute.xlu0 %467
      %469 = vrot.lane.b32.xlu0 %v466, 91
      %v470 = vpop.permute.xlu0 %469
      %vm471 = vcmask 744448
      %v472 = vsel %vm471, %v468, %v470
      %v475 = vadd.f32 %v463, %v472
      %v476 = vadd.f32 %v464, %v470
      %v477 = vrot.slane %v253, 2
      %v478 = vrot.slane %v255, 2
      %479 = vrot.lane.b32.xlu0 %v477, 80
      %v480 = vpop.permute.xlu0 %479
      %481 = vrot.lane.b32.xlu0 %v478, 80
      %v482 = vpop.permute.xlu0 %481
      %vm483 = vcmask 654336
      %v484 = vsel %vm483, %v480, %v482
      %v487 = vadd.f32 %v475, %v484
      %v488 = vadd.f32 %v476, %v482
      %v489 = vrot.slane %v253, 3
      %v490 = vrot.slane %v255, 3
      %491 = vrot.lane.b32.xlu0 %v489, 79
      %v492 = vpop.permute.xlu0 %491
      %493 = vrot.lane.b32.xlu0 %v490, 79
      %v494 = vpop.permute.xlu0 %493
      %vm495 = vcmask 646144
      %v496 = vsel %vm495, %v492, %v494
      %v499 = vadd.f32 %v487, %v496
      %v500 = vadd.f32 %v488, %v494
      %v501 = vrot.slane %v253, 4
      %v502 = vrot.slane %v255, 4
      %503 = vrot.lane.b32.xlu0 %v501, 78
      %v504 = vpop.permute.xlu0 %503
      %505 = vrot.lane.b32.xlu0 %v502, 78
      %v506 = vpop.permute.xlu0 %505
      %vm507 = vcmask 637952
      %v508 = vsel %vm507, %v504, %v506
      %v511 = vadd.f32 %v499, %v508
      %v512 = vadd.f32 %v500, %v506
      %v513 = vrot.slane %v253, 5
      %v514 = vrot.slane %v255, 5
      %515 = vrot.lane.b32.xlu0 %v513, 77
      %v516 = vpop.permute.xlu0 %515
      %517 = vrot.lane.b32.xlu0 %v514, 77
      %v518 = vpop.permute.xlu0 %517
      %vm519 = vcmask 629760
      %v520 = vsel %vm519, %v516, %v518
      %v523 = vadd.f32 %v511, %v520
      %v524 = vadd.f32 %v512, %v518
      %v525 = vrot.slane %v253, 6
      %v526 = vrot.slane %v255, 6
      %527 = vrot.lane.b32.xlu0 %v525, 76
      %v528 = vpop.permute.xlu0 %527
      %529 = vrot.lane.b32.xlu0 %v526, 76
      %v530 = vpop.permute.xlu0 %529
      %vm531 = vcmask 621568
      %v532 = vsel %vm531, %v528, %v530
      %v535 = vadd.f32 %v523, %v532
      %v536 = vadd.f32 %v524, %v530
      %v537 = vrot.slane %v253, 7
      %v538 = vrot.slane %v255, 7
      %539 = vrot.lane.b32.xlu0 %v537, 75
      %v540 = vpop.permute.xlu0 %539
      %541 = vrot.lane.b32.xlu0 %v538, 75
      %v542 = vpop.permute.xlu0 %541
      %vm543 = vcmask 613376
      %v544 = vsel %vm543, %v540, %v542
      %v547 = vadd.f32 %v535, %v544
      %v548 = vadd.f32 %v536, %v542
      %551 = vrot.lane.b32.xlu0 %v257, 64
      %v552 = vpop.permute.xlu0 %551
      %553 = vrot.lane.b32.xlu0 %v259, 64
      %v554 = vpop.permute.xlu0 %553
      %vm555 = vcmask 523264
      %v556 = vsel %vm555, %v552, %v554
      %v559 = vadd.f32 %v547, %v556
      %v560 = vadd.f32 %v548, %v554
      %v561 = vrot.slane %v257, 1
      %v562 = vrot.slane %v259, 1
      %563 = vrot.lane.b32.xlu0 %v561, 63
      %v564 = vpop.permute.xlu0 %563
      %565 = vrot.lane.b32.xlu0 %v562, 63
      %v566 = vpop.permute.xlu0 %565
      %vm567 = vcmask 515072
      %v568 = vsel %vm567, %v564, %v566
      %v571 = vadd.f32 %v559, %v568
      %v572 = vadd.f32 %v560, %v566
      %v573 = vrot.slane %v257, 2
      %v574 = vrot.slane %v259, 2
      %575 = vrot.lane.b32.xlu0 %v573, 62
      %v576 = vpop.permute.xlu0 %575
      %577 = vrot.lane.b32.xlu0 %v574, 62
      %v578 = vpop.permute.xlu0 %577
      %vm579 = vcmask 506880
      %v580 = vsel %vm579, %v576, %v578
      %v583 = vadd.f32 %v571, %v580
      %v584 = vadd.f32 %v572, %v578
      %v585 = vrot.slane %v257, 3
      %v586 = vrot.slane %v259, 3
      %587 = vrot.lane.b32.xlu0 %v585, 61
      %v588 = vpop.permute.xlu0 %587
      %589 = vrot.lane.b32.xlu0 %v586, 61
      %v590 = vpop.permute.xlu0 %589
      %vm591 = vcmask 498688
      %v592 = vsel %vm591, %v588, %v590
      %v595 = vadd.f32 %v583, %v592
      %v596 = vadd.f32 %v584, %v590
      %v597 = vrot.slane %v257, 4
      %v598 = vrot.slane %v259, 4
      %599 = vrot.lane.b32.xlu0 %v597, 60
      %v600 = vpop.permute.xlu0 %599
      %601 = vrot.lane.b32.xlu0 %v598, 60
      %v602 = vpop.permute.xlu0 %601
      %vm603 = vcmask 490496
      %v604 = vsel %vm603, %v600, %v602
      %v607 = vadd.f32 %v595, %v604
      %v608 = vadd.f32 %v596, %v602
      %v609 = vrot.slane %v257, 5
      %v610 = vrot.slane %v259, 5
      %611 = vrot.lane.b32.xlu0 %v609, 59
      %v612 = vpop.permute.xlu0 %611
      %613 = vrot.lane.b32.xlu0 %v610, 59
      %v614 = vpop.permute.xlu0 %613
      %vm615 = vcmask 482304
      %v616 = vsel %vm615, %v612, %v614
      %v619 = vadd.f32 %v607, %v616
      %v620 = vadd.f32 %v608, %v614
      %v621 = vrot.slane %v257, 6
      %v622 = vrot.slane %v259, 6
      %623 = vrot.lane.b32.xlu0 %v621, 48
      %v624 = vpop.permute.xlu0 %623
      %625 = vrot.lane.b32.xlu0 %v622, 48
      %v626 = vpop.permute.xlu0 %625
      %vm627 = vcmask 392192
      %v628 = vsel %vm627, %v624, %v626
      %v631 = vadd.f32 %v619, %v628
      %v632 = vadd.f32 %v620, %v626
      %v633 = vrot.slane %v257, 7
      %v634 = vrot.slane %v259, 7
      %635 = vrot.lane.b32.xlu0 %v633, 47
      %v636 = vpop.permute.xlu0 %635
      %637 = vrot.lane.b32.xlu0 %v634, 47
      %v638 = vpop.permute.xlu0 %637
      %vm639 = vcmask 384000
      %v640 = vsel %vm639, %v636, %v638
      %v643 = vadd.f32 %v631, %v640
      %v644 = vadd.f32 %v632, %v638
      %647 = vrot.lane.b32.xlu0 %v263, 46
      %v648 = vpop.permute.xlu0 %647
      %649 = vrot.lane.b32.xlu0 %v265, 46
      %v650 = vpop.permute.xlu0 %649
      %vm651 = vcmask 375808
      %v652 = vsel %vm651, %v648, %v650
      %v655 = vadd.f32 %v643, %v652
      %v656 = vadd.f32 %v644, %v650
      %v657 = vrot.slane %v263, 1
      %v658 = vrot.slane %v265, 1
      %659 = vrot.lane.b32.xlu0 %v657, 45
      %v660 = vpop.permute.xlu0 %659
      %661 = vrot.lane.b32.xlu0 %v658, 45
      %v662 = vpop.permute.xlu0 %661
      %vm663 = vcmask 367616
      %v664 = vsel %vm663, %v660, %v662
      %v667 = vadd.f32 %v655, %v664
      %v668 = vadd.f32 %v656, %v662
      %v669 = vrot.slane %v263, 2
      %v670 = vrot.slane %v265, 2
      %671 = vrot.lane.b32.xlu0 %v669, 44
      %v672 = vpop.permute.xlu0 %671
      %673 = vrot.lane.b32.xlu0 %v670, 44
      %v674 = vpop.permute.xlu0 %673
      %vm675 = vcmask 359424
      %v676 = vsel %vm675, %v672, %v674
      %v679 = vadd.f32 %v667, %v676
      %v680 = vadd.f32 %v668, %v674
      %v681 = vrot.slane %v263, 3
      %v682 = vrot.slane %v265, 3
      %683 = vrot.lane.b32.xlu0 %v681, 43
      %v684 = vpop.permute.xlu0 %683
      %685 = vrot.lane.b32.xlu0 %v682, 43
      %v686 = vpop.permute.xlu0 %685
      %vm687 = vcmask 351232
      %v688 = vsel %vm687, %v684, %v686
      %v691 = vadd.f32 %v679, %v688
      %v692 = vadd.f32 %v680, %v686
      %v693 = vmul.f32 %v691, 0.001
      %v694 = vmul.f32 %v692, 0.001
      %v697 = vcombine.low %v693, %v694
      %v699 = vunpack.c.l.s4 1966171168
      %v700 = vunpack.c.0.s8 %v699
      %v701 = vlaneseq
      %v702 = vshrl.u32 %v701, 7
      %v703 = vsub.s32 %v700, %v702
      %v704 = vrot.slane %v697, %v703
      %v706 = vunpack.c.l.s4 1966171168
      %v707 = vunpack.c.0.s8 %v706
      %v708 = vlaneseq
      %v709 = vshrl.u32 %v708, 7
      %v710 = vsub.s32 %v707, %v709
      %v711 = vrot.slane %v704, %v710
      %v713 = vlaneseq
      %vm714 = vcmp.ge.s32.totalorder %v713, 0
      %vm715 = vcmp.lt.s32.totalorder %v713, 171
      %vm716 = vmand %vm714, %vm715
      %717 = vst.msk [vmem:[%s161] sm:$0x3] %vm716, %v711
      %p718 = scmp.lt.s32.totalorder %s13, 1
      %s719 = scalar_select %p718, %s13, 1
      %s720 = smul.addr %s719, 2
      %s721 = scalar_lea.vmem %s2, %s720
      // Predicated region
      $region29: #{siamfc_forward.1} parent=27 // pred_check
        %p722 = pneg %p83
      $region30: #{siamfc_forward.1} parent=27 // pred_check_branch
        %724 = sbr.rel (%p722) target = $region32
      $region31: #{siamfc_forward.1} parent=27 // pred_region
        _
      $region32: #{siamfc_forward.1} parent=27 // pred_fallthru
        _
    $region28: #{siamfc_forward.1} parent=5 // pred_fallthru
      _
    %p725 = scmp.le.s32.totalorder 2, %s8
    // Predicated region
    $region33: #{siamfc_forward.1} parent=5 // pred_check
      %p726 = pneg %p725
    $region34: #{siamfc_forward.1} parent=5 // pred_check_branch
      %728 = sbr.rel (%p726) target = $region36
    $region35: #{siamfc_forward.1} parent=5 // pred_region
      %s729 = ssub.s32 %s8, 2
      // Predicated region
      $region37: #{siamfc_forward.1} parent=35 // pred_check
        %p730 = pneg %p89
      $region38: #{siamfc_forward.1} parent=35 // pred_check_branch
        %732 = sbr.rel (%p730) target = $region40
      $region39: #{siamfc_forward.1} parent=35 // pred_region
        %p733 = scmp.lt.s32.totalorder %s14, 1
        %s734 = scalar_select %p733, %s14, 1
        %s735 = smul.addr %s734, 2
        %s736 = scalar_lea.vmem %s2, %s735
      $region40: #{siamfc_forward.1} parent=35 // pred_fallthru
        _
    $region36: #{siamfc_forward.1} parent=5 // pred_fallthru
      _
  $region6: #{siamfc_forward.1} parent=0 // loop_footer
    %s12 = sadd.s32 1, %s8
  $region7: #{siamfc_forward.1} parent=0 // loop_footer_branch
    %7 = sbr.rel target = $region3
  $region8: #{siamfc_forward.1} parent=0 // loop_exit
    _

</llo_original>
